<compile_context>
chip_gen: v7x
topology: tpu7x:2x2x1
jax: 0.10.0
libtpu: 0.0.40
codegen_flags: <defaults>
</compile_context>

<pallas_src>
import functools

import jax
import jax.numpy as jnp
from jax.experimental import pallas as pl
from jax.experimental.pallas import tpu as pltpu


def _round_up(x, m):
    return ((x + m - 1) // m) * m


# ----------------------------- Pallas kernel --------------------------------
def fused_gin_kernel(x_hbm, a_ref, w1_ref, t1_ref, w2_ref, t2_ref,
                     o_ref, act_ref, seed_sem, *,
                     num_layer, tile_m, a_resident):
    """One grid step = one (layer, node-row-tile) pair.

    x_hbm   : (n_pad, d_pad)    bf16  padded input features (HBM, pl.ANY)
    a_ref   : (n_pad, n_pad) resident | (tile_m, n_pad) streamed   bf16 A_hat
    w1_ref  : (1, d_pad, h_pad) bf16  folded Linear1 weight of this layer
    t1_ref  : (1, 1, h_pad)     f32   folded Linear1 bias + BN shift
    w2_ref  : (1, h_pad, d_pad) bf16  folded Linear2 weight
    t2_ref  : (1, 1, d_pad)     f32   folded Linear2 bias + BN shift
    o_ref   : (tile_m, d_pad)   f32   output row tile (written on last layer)
    act_ref : (2, n_pad, d_pad) bf16  ping-pong activation scratch
    seed_sem: DMA semaphore for the one-time x -> act[0] seed copy
    """
    l = pl.program_id(0)          # layer index   (slow, sequential)
    i = pl.program_id(1)          # node row tile (fast)

    # Seed ping-pong slot 0 with the input features exactly once.  x stays in
    # HBM otherwise (no double-buffered VMEM copy of the input).
    @pl.when(jnp.logical_and(l == 0, i == 0))
    def _():
        cp = pltpu.make_async_copy(x_hbm, act_ref.at[0], seed_sem)
        cp.start()
        cp.wait()

    read_slot = l % 2
    write_slot = 1 - read_slot
    row_off = pl.multiple_of(i * tile_m, tile_m)

    # GIN aggregation for this row tile: A_hat[rows, :] @ act
    # (bf16 x bf16 -> f32 accumulation on the MXU, no f32 upcast of A).
    if a_resident:
        a_tile = a_ref[pl.ds(row_off, tile_m), :]
    else:
        a_tile = a_ref[...]
    h = jnp.dot(a_tile, act_ref[read_slot],
                preferred_element_type=jnp.float32)

    # MLP with BN/bias pre-folded: relu(h @ w1 + t1) @ w2 + t2  (MXU #2, #3).
    z = jnp.maximum(
        jnp.dot(h.astype(jnp.bfloat16), w1_ref[0],
                preferred_element_type=jnp.float32) + t1_ref[0],
        0.0)
    y = jnp.dot(z.astype(jnp.bfloat16), w2_ref[0],
                preferred_element_type=jnp.float32) + t2_ref[0]

    # Outer ReLU on every layer except the last (always applied if 1 layer).
    if num_layer == 1:
        y = jnp.maximum(y, 0.0)
    else:
        y = jnp.where(l != num_layer - 1, jnp.maximum(y, 0.0), y)

    # Stash rows for the next layer (dropout = identity in eval mode).
    act_ref[write_slot, pl.ds(row_off, tile_m), :] = y.astype(jnp.bfloat16)

    # Only the final layer emits the output tile (earlier revisits skip the
    # store; their stale writebacks are overwritten by the last layer).
    @pl.when(l == num_layer - 1)
    def _():
        o_ref[...] = y


# ----------------------------- wrapper / glue --------------------------------
def _fold_and_pad_params(params, d_pad, h_pad):
    """Fold BN + bias into the Linears, zero-pad to lane width, stack, cast."""
    w1s, t1s, w2s, t2s = [], [], [], []
    for p in params:
        w1f = p["w1"] * p["s1"]                 # (d_in, hid) * (1, hid)
        t1f = p["b1"] * p["s1"] + p["t1"]       # (1, hid)
        w2f = p["w2"] * p["s2"]                 # (hid, emb) * (1, emb)
        t2f = p["b2"] * p["s2"] + p["t2"]       # (1, emb)
        d_in, hid = w1f.shape
        emb = w2f.shape[1]
        w1s.append(jnp.zeros((d_pad, h_pad), jnp.float32).at[:d_in, :hid].set(w1f))
        t1s.append(jnp.zeros((1, h_pad), jnp.float32).at[:, :hid].set(t1f))
        w2s.append(jnp.zeros((h_pad, d_pad), jnp.float32).at[:hid, :emb].set(w2f))
        t2s.append(jnp.zeros((1, d_pad), jnp.float32).at[:, :emb].set(t2f))
    # Weights in bf16 (MXU rate + half the per-layer DMA); biases stay f32.
    return (jnp.stack(w1s).astype(jnp.bfloat16), jnp.stack(t1s),
            jnp.stack(w2s).astype(jnp.bfloat16), jnp.stack(t2s))


def gin_encoder_forward(x, edge_index, params, eps=0.0, tile_m=128):
    """x: (N, in_dim) f32; edge_index: (2, E) int32 (row 0 = src, row 1 = dst)."""
    n, in_dim = x.shape
    num_layer = len(params)
    hid = params[0]["w1"].shape[1]
    emb = params[0]["w2"].shape[1]

    assert tile_m % 128 == 0, "row tile must be a multiple of 128 (MXU rows)"
    d_pad = _round_up(max(in_dim, emb), 128)    # lane-dense feature width
    h_pad = _round_up(hid, 128)
    n_pad = _round_up(n, tile_m)                # tile_m % 128 == 0 -> aligned K

    # Dense A_hat = A + (1+eps) I (real diagonal only).  Edge multiplicities
    # are small integers -> exact in bf16 (nonzero eps rounds to bf16, ~0.4%).
    src, dst = edge_index[0], edge_index[1]
    a = jnp.zeros((n_pad, n_pad), jnp.float32).at[dst, src].add(1.0)
    a = a.at[jnp.arange(n), jnp.arange(n)].add(1.0 + eps)
    a_hat = a.astype(jnp.bfloat16)

    x_pad = (jnp.zeros((n_pad, d_pad), jnp.float32)
             .at[:n, :in_dim].set(x).astype(jnp.bfloat16))
    w1, t1, w2, t2 = _fold_and_pad_params(params, d_pad, h_pad)

    # ---- VMEM budgeting: keep A resident when it fits next to everything
    # else (v5e/v6e 128 MiB: almost always; v7x 64 MiB: streamed fallback).
    try:
        vmem_cap = int(pltpu.get_tpu_info().vmem_capacity_bytes)
    except Exception:
        vmem_cap = 64 * 1024 * 1024             # conservative (v7x per-core)
    budget = int(0.85 * vmem_cap)
    act_bytes = 2 * n_pad * d_pad * 2                       # bf16 ping-pong
    w_bytes = 2 * (d_pad * h_pad + h_pad * d_pad) * 2       # bf16, 2-deep
    b_bytes = 2 * (h_pad + d_pad) * 4
    out_bytes = 2 * tile_m * d_pad * 4
    a_full_bytes = n_pad * n_pad * 2
    a_stream_bytes = 2 * tile_m * n_pad * 2
    base = act_bytes + w_bytes + b_bytes + out_bytes + 2 * 1024 * 1024
    a_resident = (base + 2 * a_full_bytes) <= budget        # 2x: double-buffer
    vmem_limit = min(budget, max(
        32 * 1024 * 1024,
        base + (2 * a_full_bytes if a_resident else a_stream_bytes)))

    if a_resident:
        # Fetched once (constant index map), read row-tiles from VMEM in-kernel.
        a_spec = pl.BlockSpec((n_pad, n_pad), lambda l, i: (0, 0))
    else:
        # Row-streamed: only a (tile_m, n_pad) slab double-buffered at a time.
        a_spec = pl.BlockSpec((tile_m, n_pad), lambda l, i: (i, 0))

    grid = (num_layer, n_pad // tile_m)
    kernel = functools.partial(fused_gin_kernel, num_layer=num_layer,
                               tile_m=tile_m, a_resident=a_resident)
    out_pad = pl.pallas_call(
        kernel,
        out_shape=jax.ShapeDtypeStruct((n_pad, d_pad), jnp.float32),
        grid_spec=pltpu.PrefetchScalarGridSpec(
            num_scalar_prefetch=0,
            grid=grid,
            in_specs=[
                # x stays in HBM; one-time DMA into the activation scratch.
                pl.BlockSpec(memory_space=pl.ANY),
                # A_hat: resident or row-streamed (see above).
                a_spec,
                # Per-layer folded weights: refetched only when l changes.
                pl.BlockSpec((1, d_pad, h_pad), lambda l, i: (l, 0, 0)),
                pl.BlockSpec((1, 1, h_pad), lambda l, i: (l, 0, 0)),
                pl.BlockSpec((1, h_pad, d_pad), lambda l, i: (l, 0, 0)),
                pl.BlockSpec((1, 1, d_pad), lambda l, i: (l, 0, 0)),
            ],
            out_specs=pl.BlockSpec((tile_m, d_pad), lambda l, i: (i, 0)),
            scratch_shapes=[pltpu.VMEM((2, n_pad, d_pad), jnp.bfloat16),
                            pltpu.SemaphoreType.DMA(())],
        ),
        compiler_params=pltpu.CompilerParams(
            dimension_semantics=("arbitrary", "arbitrary"),
            vmem_limit_bytes=vmem_limit),
    )(x_pad, a_hat, w1, t1, w2, t2)
    return out_pad[:n, :emb]


# ----------------------------- parameter setup ------------------------------
def _bn_affine(key, dim):
    """Deterministic synthetic BatchNorm params as per-channel scale/shift."""
    k1, k2, k3, k4 = jax.random.split(key, 4)
    gamma = 1.0 + 0.1 * jax.random.normal(k1, (dim,), jnp.float32)
    beta = 0.1 * jax.random.normal(k2, (dim,), jnp.float32)
    mean = 0.1 * jax.random.normal(k3, (dim,), jnp.float32)
    var = 1.0 + 0.1 * jax.random.uniform(k4, (dim,), jnp.float32)
    eps = 1e-5
    scale = gamma / jnp.sqrt(var + eps)
    shift = beta - mean * scale
    return scale.reshape(1, dim), shift.reshape(1, dim)


def init_gin_encoder_params(key, num_layer, in_dim, emb_dim):
    params = []
    d_in = in_dim
    for _ in range(num_layer):
        key, k1, k2, k3, k4, k5, k6 = jax.random.split(key, 7)
        hid = 2 * emb_dim
        w1 = (jax.random.normal(k1, (d_in, hid), jnp.float32)
              / jnp.sqrt(jnp.float32(d_in)))
        b1 = 0.05 * jax.random.normal(k2, (1, hid), jnp.float32)
        s1, t1 = _bn_affine(k3, hid)                 # BN inside the GIN MLP
        w2 = (jax.random.normal(k4, (hid, emb_dim), jnp.float32)
              / jnp.sqrt(jnp.float32(hid)))
        b2 = 0.05 * jax.random.normal(k5, (1, emb_dim), jnp.float32)
        s2, t2 = _bn_affine(k6, emb_dim)             # outer BatchNorm1d
        params.append(dict(w1=w1, b1=b1, s1=s1, t1=t1,
                           w2=w2, b2=b2, s2=s2, t2=t2))
        d_in = emb_dim
    return params


# ----------------------------- pure-JAX reference ----------------------------
def gin_encoder_reference(x, edge_index, params, eps=0.0):
    n = x.shape[0]
    src, dst = edge_index[0], edge_index[1]
    adj = jnp.zeros((n, n), jnp.float32).at[dst, src].add(1.0)
    a_hat = adj + (1.0 + eps) * jnp.eye(n, dtype=jnp.float32)
    post = x
    num_layer = len(params)
    for l, p in enumerate(params):
        h = a_hat @ post
        z = jnp.maximum((h @ p["w1"] + p["b1"]) * p["s1"] + p["t1"], 0.0)
        y = (z @ p["w2"] + p["b2"]) * p["s2"] + p["t2"]
        if l == 0 or l != num_layer - 1:
            y = jnp.maximum(y, 0.0)
        post = y
    return post


# --------------------------------- main --------------------------------------
if __name__ == "__main__":
    key = jax.random.PRNGKey(0)

    num_layer = 3
    in_dim = 8
    emb_dim = 32
    num_nodes = 24          # padded to 128 rows inside the wrapper
    num_edges = 60

    k_x, k_e1, k_e2, k_p = jax.random.split(key, 4)
    x = jax.random.normal(k_x, (num_nodes, in_dim), jnp.float32)
    src = jax.random.randint(k_e1, (num_edges,), 0, num_nodes, jnp.int32)
    dst = jax.random.randint(k_e2, (num_edges,), 0, num_nodes, jnp.int32)
    edge_index = jnp.stack([src, dst], axis=0)

    params = init_gin_encoder_params(k_p, num_layer, in_dim, emb_dim)

    out = gin_encoder_forward(x, edge_index, params, tile_m=128)
    out = jax.block_until_ready(out)

    ref = gin_encoder_reference(x, edge_index, params)
    assert out.shape == (num_nodes, emb_dim)
    # bf16 weights/activations (f32 accumulation) vs f32 reference.
    rel_err = jnp.linalg.norm(out - ref) / (jnp.linalg.norm(ref) + 1e-6)
    assert rel_err < 2e-2, f"relative error too large: {rel_err}"
    assert jnp.allclose(out, ref, atol=1e-1, rtol=1e-1), "mismatch vs reference"

    print("KERNEL_OK")
</pallas_src>

<mosaic_0001>
module attributes {stable_mosaic.version = 11 : i64} {
  func.func @fused_gin_kernel(%arg0: i32, %arg1: i32, %arg2: memref<128x128xbf16, #tpu.memory_space<any>>, %arg3: memref<128x128xbf16, #tpu.memory_space<vmem>>, %arg4: memref<1x128x128xbf16, #tpu.memory_space<vmem>>, %arg5: memref<1x1x128xf32, #tpu.memory_space<vmem>>, %arg6: memref<1x128x128xbf16, #tpu.memory_space<vmem>>, %arg7: memref<1x1x128xf32, #tpu.memory_space<vmem>>, %arg8: memref<128x128xf32, #tpu.memory_space<vmem>>, %arg9: memref<2x128x128xbf16, #tpu.memory_space<vmem>>, %arg10: memref<!tpu.dma_semaphore, #tpu.memory_space<semaphore_mem>>) attributes {dimension_semantics = [#tpu.dimension_semantics<arbitrary>, #tpu.dimension_semantics<arbitrary>], iteration_bounds = array<i64: 3, 1>, scalar_prefetch = 0 : i64, scratch_operands = 2 : i64, tpu.core_type = #tpu.core_type<tc>, window_params = [{}, {pipeline_mode = #tpu.pipeline_mode<synchronous>, transform_indices = @transform_1, window_bounds = array<i64: 128, 128>}, {transform_indices = @transform_2, window_bounds = array<i64: 1, 128, 128>}, {transform_indices = @transform_3, window_bounds = array<i64: 1, 1, 128>}, {transform_indices = @transform_4, window_bounds = array<i64: 1, 128, 128>}, {transform_indices = @transform_5, window_bounds = array<i64: 1, 1, 128>}, {transform_indices = @transform_6, window_bounds = array<i64: 128, 128>}]} {
    %c0_i32 = arith.constant 0 : i32
    %0 = arith.cmpi eq, %arg0, %c0_i32 : i32
    %c0_i32_0 = arith.constant 0 : i32
    %1 = arith.cmpi eq, %arg1, %c0_i32_0 : i32
    %2 = arith.andi %0, %1 : i1
    %3 = arith.extui %2 : i1 to i32
    %c0_i32_1 = arith.constant 0 : i32
    %4 = arith.cmpi ne, %3, %c0_i32_1 : i32
    scf.if %4 {
      %c0_i32_29 = arith.constant 0 : i32
      %c0_i32_30 = arith.constant 0 : i32
      %c0_i32_31 = arith.constant 0 : i32
      %55 = tpu.memref_slice %arg9[%c0_i32_29, %c0_i32_30, %c0_i32_31] : memref<2x128x128xbf16, #tpu.memory_space<vmem>> -> memref<1x128x128xbf16, #tpu.memory_space<vmem>>
      %56 = tpu.memref_squeeze %55 : memref<1x128x128xbf16, #tpu.memory_space<vmem>> -> memref<128x128xbf16, #tpu.memory_space<vmem>>
      tpu.enqueue_dma source(%arg2 : memref<128x128xbf16, #tpu.memory_space<any>>) target(%56 : memref<128x128xbf16, #tpu.memory_space<vmem>>) target_semaphore(%arg10 : memref<!tpu.dma_semaphore, #tpu.memory_space<semaphore_mem>>)
      %c0_i32_32 = arith.constant 0 : i32
      %c0_i32_33 = arith.constant 0 : i32
      %c0_i32_34 = arith.constant 0 : i32
      %57 = tpu.memref_slice %arg9[%c0_i32_32, %c0_i32_33, %c0_i32_34] : memref<2x128x128xbf16, #tpu.memory_space<vmem>> -> memref<1x128x128xbf16, #tpu.memory_space<vmem>>
      %58 = tpu.memref_squeeze %57 : memref<1x128x128xbf16, #tpu.memory_space<vmem>> -> memref<128x128xbf16, #tpu.memory_space<vmem>>
      tpu.wait_dma2 semaphore(%arg10 : memref<!tpu.dma_semaphore, #tpu.memory_space<semaphore_mem>>) src(%arg2 : memref<128x128xbf16, #tpu.memory_space<any>>) dst(%58 : memref<128x128xbf16, #tpu.memory_space<vmem>>)
    } else {
    }
    %c2_i32 = arith.constant 2 : i32
    %c0_i32_2 = arith.constant 0 : i32
    %5 = arith.cmpi eq, %c2_i32, %c0_i32_2 : i32
    %c1_i32 = arith.constant 1 : i32
    %6 = arith.select %5, %c1_i32, %c2_i32 : i32
    %7 = arith.remsi %arg0, %6 : i32
    %c0_i32_3 = arith.constant 0 : i32
    %8 = arith.cmpi ne, %7, %c0_i32_3 : i32
    %c0_i32_4 = arith.constant 0 : i32
    %9 = arith.cmpi slt, %7, %c0_i32_4 : i32
    %c0_i32_5 = arith.constant 0 : i32
    %10 = arith.cmpi slt, %6, %c0_i32_5 : i32
    %11 = arith.xori %9, %10 : i1
    %12 = arith.andi %11, %8 : i1
    %13 = arith.addi %7, %6 : i32
    %14 = arith.select %12, %13, %7 : i32
    %c1_i32_6 = arith.constant 1 : i32
    %15 = arith.subi %c1_i32_6, %14 : i32
    %c128_i32 = arith.constant 128 : i32
    %16 = arith.muli %arg1, %c128_i32 : i32
    %17 = tpu.assume_multiple %16, 128 : i32
    %18 = arith.index_cast %17 : i32 to index
    %c0 = arith.constant 0 : index
    %19 = vector.load %arg3[%18, %c0] : memref<128x128xbf16, #tpu.memory_space<vmem>>, vector<128x128xbf16>
    %20 = arith.index_cast %14 : i32 to index
    %c0_7 = arith.constant 0 : index
    %c0_8 = arith.constant 0 : index
    %21 = vector.load %arg9[%20, %c0_7, %c0_8] : memref<2x128x128xbf16, #tpu.memory_space<vmem>>, vector<1x128x128xbf16>
    %22 = vector.shape_cast %21 : vector<1x128x128xbf16> to vector<128x128xbf16>
    %cst = arith.constant dense<0.000000e+00> : vector<128x128xf32>
    %23 = tpu.matmul %19, %22, %cst {dimension_numbers = #tpu.dot_dimension_numbers<[1], [0], [0], [1], [0, 0, 1, 1], [], []>} : vector<128x128xbf16>, vector<128x128xbf16>, vector<128x128xf32> -> vector<128x128xf32>
    %24 = arith.truncf %23 : vector<128x128xf32> to vector<128x128xbf16>
    %c0_9 = arith.constant 0 : index
    %c0_10 = arith.constant 0 : index
    %c0_11 = arith.constant 0 : index
    %25 = vector.load %arg4[%c0_9, %c0_10, %c0_11] : memref<1x128x128xbf16, #tpu.memory_space<vmem>>, vector<1x128x128xbf16>
    %26 = vector.shape_cast %25 : vector<1x128x128xbf16> to vector<128x128xbf16>
    %cst_12 = arith.constant dense<0.000000e+00> : vector<128x128xf32>
    %27 = tpu.matmul %24, %26, %cst_12 {dimension_numbers = #tpu.dot_dimension_numbers<[1], [0], [0], [1], [0, 0, 1, 1], [], []>} : vector<128x128xbf16>, vector<128x128xbf16>, vector<128x128xf32> -> vector<128x128xf32>
    %c0_13 = arith.constant 0 : index
    %c0_14 = arith.constant 0 : index
    %c0_15 = arith.constant 0 : index
    %28 = vector.load %arg5[%c0_13, %c0_14, %c0_15] : memref<1x1x128xf32, #tpu.memory_space<vmem>>, vector<1x1x128xf32>
    %29 = vector.shape_cast %28 : vector<1x1x128xf32> to vector<1x128xf32>
    %30 = vector.broadcast %29 : vector<1x128xf32> to vector<128x128xf32>
    %31 = arith.addf %27, %30 : vector<128x128xf32>
    %cst_16 = arith.constant 0.000000e+00 : f32
    %32 = vector.broadcast %cst_16 : f32 to vector<128x128xf32>
    %33 = arith.maximumf %31, %32 : vector<128x128xf32>
    %34 = arith.truncf %33 : vector<128x128xf32> to vector<128x128xbf16>
    %c0_17 = arith.constant 0 : index
    %c0_18 = arith.constant 0 : index
    %c0_19 = arith.constant 0 : index
    %35 = vector.load %arg6[%c0_17, %c0_18, %c0_19] : memref<1x128x128xbf16, #tpu.memory_space<vmem>>, vector<1x128x128xbf16>
    %36 = vector.shape_cast %35 : vector<1x128x128xbf16> to vector<128x128xbf16>
    %cst_20 = arith.constant dense<0.000000e+00> : vector<128x128xf32>
    %37 = tpu.matmul %34, %36, %cst_20 {dimension_numbers = #tpu.dot_dimension_numbers<[1], [0], [0], [1], [0, 0, 1, 1], [], []>} : vector<128x128xbf16>, vector<128x128xbf16>, vector<128x128xf32> -> vector<128x128xf32>
    %c0_21 = arith.constant 0 : index
    %c0_22 = arith.constant 0 : index
    %c0_23 = arith.constant 0 : index
    %38 = vector.load %arg7[%c0_21, %c0_22, %c0_23] : memref<1x1x128xf32, #tpu.memory_space<vmem>>, vector<1x1x128xf32>
    %39 = vector.shape_cast %38 : vector<1x1x128xf32> to vector<1x128xf32>
    %40 = vector.broadcast %39 : vector<1x128xf32> to vector<128x128xf32>
    %41 = arith.addf %37, %40 : vector<128x128xf32>
    %c2_i32_24 = arith.constant 2 : i32
    %42 = arith.cmpi ne, %arg0, %c2_i32_24 : i32
    %cst_25 = arith.constant 0.000000e+00 : f32
    %43 = vector.broadcast %cst_25 : f32 to vector<128x128xf32>
    %44 = arith.maximumf %41, %43 : vector<128x128xf32>
    %45 = arith.select %42, %44, %41 : vector<128x128xf32>
    %46 = arith.truncf %45 : vector<128x128xf32> to vector<128x128xbf16>
    %47 = arith.index_cast %15 : i32 to index
    %48 = arith.index_cast %17 : i32 to index
    %c0_26 = arith.constant 0 : index
    %49 = vector.load %arg9[%47, %48, %c0_26] : memref<2x128x128xbf16, #tpu.memory_space<vmem>>, vector<1x128x128xbf16>
    %50 = vector.shape_cast %49 : vector<1x128x128xbf16> to vector<128x128xbf16>
    %51 = vector.shape_cast %46 : vector<128x128xbf16> to vector<1x128x128xbf16>
    tpu.vector_store %arg9[%47, %48, %c0_26], %51 {strides = array<i32>} : memref<2x128x128xbf16, #tpu.memory_space<vmem>>, vector<1x128x128xbf16>,
    %c2_i32_27 = arith.constant 2 : i32
    %52 = arith.cmpi eq, %arg0, %c2_i32_27 : i32
    %53 = arith.extui %52 : i1 to i32
    %c0_i32_28 = arith.constant 0 : i32
    %54 = arith.cmpi ne, %53, %c0_i32_28 : i32
    scf.if %54 {
      %c0_29 = arith.constant 0 : index
      %c0_30 = arith.constant 0 : index
      %55 = vector.load %arg8[%c0_29, %c0_30] : memref<128x128xf32, #tpu.memory_space<vmem>>, vector<128x128xf32>
      tpu.vector_store %arg8[%c0_29, %c0_30], %45 {strides = array<i32>} : memref<128x128xf32, #tpu.memory_space<vmem>>, vector<128x128xf32>,
    } else {
    }
    return
  }
  func.func @transform_1(%arg0: i32, %arg1: i32) -> (i32, i32) {
    %c0_i32 = arith.constant 0 : i32
    %c0_i32_0 = arith.constant 0 : i32
    %c0_i32_1 = arith.constant 0 : i32
    return %c0_i32, %c0_i32_0 : i32, i32
  }
  func.func @transform_2(%arg0: i32, %arg1: i32) -> (i32, i32, i32) {
    %c0_i32 = arith.constant 0 : i32
    %c0_i32_0 = arith.constant 0 : i32
    %c0_i32_1 = arith.constant 0 : i32
    return %arg0, %c0_i32, %c0_i32_0 : i32, i32, i32
  }
  func.func @transform_3(%arg0: i32, %arg1: i32) -> (i32, i32, i32) {
    %c0_i32 = arith.constant 0 : i32
    %c0_i32_0 = arith.constant 0 : i32
    %c0_i32_1 = arith.constant 0 : i32
    return %arg0, %c0_i32, %c0_i32_0 : i32, i32, i32
  }
  func.func @transform_4(%arg0: i32, %arg1: i32) -> (i32, i32, i32) {
    %c0_i32 = arith.constant 0 : i32
    %c0_i32_0 = arith.constant 0 : i32
    %c0_i32_1 = arith.constant 0 : i32
    return %arg0, %c0_i32, %c0_i32_0 : i32, i32, i32
  }
  func.func @transform_5(%arg0: i32, %arg1: i32) -> (i32, i32, i32) {
    %c0_i32 = arith.constant 0 : i32
    %c0_i32_0 = arith.constant 0 : i32
    %c0_i32_1 = arith.constant 0 : i32
    return %arg0, %c0_i32, %c0_i32_0 : i32, i32, i32
  }
  func.func @transform_6(%arg0: i32, %arg1: i32) -> (i32, i32) {
    %c0_i32 = arith.constant 0 : i32
    %c0_i32_0 = arith.constant 0 : i32
    return %arg1, %c0_i32 : i32, i32
  }
}

</mosaic_0001>

<llo_original>
// kernel: tpu_custom_call.1
$region0: #{tpu_custom_call.1}
  #allocation0 [shape = 'u32[]', space=smem, size = 0x4, offset = 0x4, fixed_abs, tag = 'smem constant byte address 0x4 - core index']
  #allocation1 [shape = 'u32[144,128]{1,0:T(1,128)}', space=vmem, size = 0x12000, scoped, tag = 'internal scratch']
  #allocation2 [shape = 'bf16[2,128,128]{2,1,0:T(16,128)(2,1)}', space=vmem, size = 0x10000, scoped, tag = 'scratch operand']
  #allocation3 [shape = 's32[1]{0}', space=sflag, size = 0x4, scoped, tag = 'scratch operand']
  #allocation11 [shape = 's32[]', space=sflag, size = 0x4, offset = 0, fixed_abs, tag = 'sflag constant byte address 0x0 - dummy sync flag']
  #allocation12 [shape = 's32[]', space=sflag, size = 0x4, offset = 0, fixed_abs, tag = 'sflag constant byte address 0x0 - dummy sync flag']
  #allocation13 [shape = 'u32[]', space=smem, size = 0x4, offset = 0x44, fixed_abs, tag = 'smem constant byte address 0x44 - assertion arg 0']
  #allocation14 [shape = 'u32[]', space=smem, size = 0x4, offset = 0x48, fixed_abs, tag = 'smem constant byte address 0x48 - assertion arg 1']
  %s0 = inlined_call_operand.hbm [shape: bf16[128,128], index: 0, kind: input, shape index: {}]
  %s1 = inlined_call_operand.hbm [shape: bf16[128,128], index: 1, kind: input, shape index: {}]
  %s2 = inlined_call_operand.hbm [shape: bf16[3,128,128], index: 2, kind: input, shape index: {}]
  %s3 = inlined_call_operand.vmem [shape: f32[3,1,128], index: 3, kind: input, shape index: {}]
  %s4 = inlined_call_operand.hbm [shape: bf16[3,128,128], index: 4, kind: input, shape index: {}]
  %s5 = inlined_call_operand.vmem [shape: f32[3,1,128], index: 5, kind: input, shape index: {}]
  %s6 = inlined_call_operand.hbm [shape: f32[128,128], index: 6, kind: output, shape index: {}]
  %s7 = sld [smem:[#allocation0]]
  $region77: #{tpu_custom_call.1} parent=0
    _
  %s9 = ssub.s32 1, %s7
  %s10 = scalar_select 0, %s9, %s7
  $region1: #{tpu_custom_call.1} parent=0
    #allocation4 [shape = 'u8[32768]{0}', space=vmem, size = 0x8000, scoped, tag = 'input window, operand 1, single buffered']
    #allocation5 [shape = 's32[2]{0}', space=sflag, size = 0x8, scoped, tag = 'scoped memory for tpu_custom_call.1']
    #allocation6 [shape = 's32[2]{0}', space=sflag, size = 0x8, scoped, tag = 'scoped memory for tpu_custom_call.1']
    #allocation7 [shape = 'u8[65536]{0}', space=vmem, size = 0x10000, scoped, tag = 'input window, operand 2']
    #allocation8 [shape = 's32[2]{0}', space=sflag, size = 0x8, scoped, tag = 'scoped memory for tpu_custom_call.1']
    #allocation9 [shape = 'u8[65536]{0}', space=vmem, size = 0x10000, scoped, tag = 'input window, operand 4']
    #allocation10 [shape = 'u8[65536]{0}', space=vmem, size = 0x10000, scoped, tag = 'output window, operand 0, single buffered']
    %11 = vsyncpa [#allocation5], 0
    %12 = vsyncpa [#allocation8], 0
    %s13 = scalar_lea.sflag [#allocation8], 1
    %14 = vsyncpa %s13, 0
    %15 = vsyncpa [#allocation6], 0
    loop: start=0, step=1, limit=5
    $region2: #{tpu_custom_call.1} parent=1 // loop_pre_header
      _
    $region3: #{tpu_custom_call.1} parent=1 // loop_header
      %s17 = sphi 0, %s21
      %p18 = scmp.ge.s32.totalorder %s17, 5
      %s24 = sphi 0, %s36
      %s25 = sphi 0, %s32
      %s26 = sphi 0, %s24
      %s27 = sphi 0, %s25
      %s28 = sphi 0, %s26
      %s29 = sphi 0, %s27
      %s37 = sphi 0, %s37
      %s39 = sphi 0, %s37
      %s40 = sphi 0, %s39
      %s54 = sphi 0, %s40
      %s60 = sphi 0, %s62
      %s63 = sphi 0, %s60
      %s64 = sphi 0, %s63
      %s80 = sphi 0, %s64
      %s86 = sphi 0, %s88
      %s89 = sphi 0, %s86
      %s90 = sphi 0, %s89
      %s106 = sphi 0, %s90
      %s112 = sphi 0, %s114
      %s115 = sphi 0, %s112
      %s116 = sphi 0, %s115
      %s132 = sphi 0, %s116
      %s138 = sphi 0, %s140
      %s141 = sphi 0, %s138
      %s142 = sphi 0, %s141
      %s158 = sphi 0, %s142
      %s164 = sphi 0, %s166
      %s167 = sphi 0, %s164
      %s168 = sphi 0, %s167
      %s184 = sphi 0, %s168
    $region4: #{tpu_custom_call.1} parent=1 // loop_header_branch
      %20 = sbr.rel (%p18) target = $region8
    $region5: #{tpu_custom_call.1} parent=1 // loop_body
      %s22 = ssub.s32 %s17, 1
      %s23 = ssub.s32 %s17, 2
      %s30 = sadd.s32 1, %s25
      %p31 = scmp.ge.s32.totalorder %s30, 1
      %s32 = scalar_select %p31, 0, %s30
      %s33 = sadd.s32 1, %s24
      %s34 = scalar_select %p31, %s33, %s24
      %p35 = scmp.ge.s32.totalorder %s34, 3
      %s36 = scalar_select %p35, 0, %s34
      %s38 = sadd.s32 %s37, 1
      %p41 = scmp.eq.s32.totalorder %s17, 2
      %p42 = scmp.ne.s32.totalorder %s37, %s39
      %p43 = scmp.eq.s32.totalorder %s17, 0
      %p44 = por %p42, %p43
      %p45 = scmp.ne.s32.totalorder %s37, %s39
      %p46 = scmp.eq.s32.totalorder %s22, 2
      %p47 = por %p45, %p46
      %p48 = scmp.ne.s32.totalorder %s39, %s40
      %p49 = scmp.eq.s32.totalorder %s22, 0
      %p50 = por %p48, %p49
      %p51 = scmp.ne.s32.totalorder %s39, %s40
      %p52 = scmp.eq.s32.totalorder %s23, 2
      %p53 = por %p51, %p52
      %p55 = scmp.ne.s32.totalorder %s40, %s54
      %p56 = scmp.eq.s32.totalorder %s23, 0
      %p57 = por %p55, %p56
      %s58 = ssub.s32 %s24, %s36
      %p59 = scmp.eq.s32.totalorder %s58, 0
      %s61 = sadd.s32 %s60, 1
      %s62 = scalar_select %p59, %s60, %s61
      %p65 = pneg %p59
      %p66 = scmp.eq.s32.totalorder %s17, 2
      %p67 = por %p65, %p66
      %p68 = scmp.ne.s32.totalorder %s60, %s63
      %p69 = scmp.eq.s32.totalorder %s17, 0
      %p70 = por %p68, %p69
      %p71 = scmp.ne.s32.totalorder %s60, %s63
      %p72 = scmp.eq.s32.totalorder %s22, 2
      %p73 = por %p71, %p72
      %p74 = scmp.ne.s32.totalorder %s63, %s64
      %p75 = scmp.eq.s32.totalorder %s22, 0
      %p76 = por %p74, %p75
      %p77 = scmp.ne.s32.totalorder %s63, %s64
      %p78 = scmp.eq.s32.totalorder %s23, 2
      %p79 = por %p77, %p78
      %p81 = scmp.ne.s32.totalorder %s64, %s80
      %p82 = scmp.eq.s32.totalorder %s23, 0
      %p83 = por %p81, %p82
      %s84 = ssub.s32 %s24, %s36
      %p85 = scmp.eq.s32.totalorder %s84, 0
      %s87 = sadd.s32 %s86, 1
      %s88 = scalar_select %p85, %s86, %s87
      %p91 = pneg %p85
      %p92 = scmp.eq.s32.totalorder %s17, 2
      %p93 = por %p91, %p92
      %p94 = scmp.ne.s32.totalorder %s86, %s89
      %p95 = scmp.eq.s32.totalorder %s17, 0
      %p96 = por %p94, %p95
      %p97 = scmp.ne.s32.totalorder %s86, %s89
      %p98 = scmp.eq.s32.totalorder %s22, 2
      %p99 = por %p97, %p98
      %p100 = scmp.ne.s32.totalorder %s89, %s90
      %p101 = scmp.eq.s32.totalorder %s22, 0
      %p102 = por %p100, %p101
      %p103 = scmp.ne.s32.totalorder %s89, %s90
      %p104 = scmp.eq.s32.totalorder %s23, 2
      %p105 = por %p103, %p104
      %p107 = scmp.ne.s32.totalorder %s90, %s106
      %p108 = scmp.eq.s32.totalorder %s23, 0
      %p109 = por %p107, %p108
      %s110 = ssub.s32 %s24, %s36
      %p111 = scmp.eq.s32.totalorder %s110, 0
      %s113 = sadd.s32 %s112, 1
      %s114 = scalar_select %p111, %s112, %s113
      %p117 = pneg %p111
      %p118 = scmp.eq.s32.totalorder %s17, 2
      %p119 = por %p117, %p118
      %p120 = scmp.ne.s32.totalorder %s112, %s115
      %p121 = scmp.eq.s32.totalorder %s17, 0
      %p122 = por %p120, %p121
      %p123 = scmp.ne.s32.totalorder %s112, %s115
      %p124 = scmp.eq.s32.totalorder %s22, 2
      %p125 = por %p123, %p124
      %p126 = scmp.ne.s32.totalorder %s115, %s116
      %p127 = scmp.eq.s32.totalorder %s22, 0
      %p128 = por %p126, %p127
      %p129 = scmp.ne.s32.totalorder %s115, %s116
      %p130 = scmp.eq.s32.totalorder %s23, 2
      %p131 = por %p129, %p130
      %p133 = scmp.ne.s32.totalorder %s116, %s132
      %p134 = scmp.eq.s32.totalorder %s23, 0
      %p135 = por %p133, %p134
      %s136 = ssub.s32 %s24, %s36
      %p137 = scmp.eq.s32.totalorder %s136, 0
      %s139 = sadd.s32 %s138, 1
      %s140 = scalar_select %p137, %s138, %s139
      %p143 = pneg %p137
      %p144 = scmp.eq.s32.totalorder %s17, 2
      %p145 = por %p143, %p144
      %p146 = scmp.ne.s32.totalorder %s138, %s141
      %p147 = scmp.eq.s32.totalorder %s17, 0
      %p148 = por %p146, %p147
      %p149 = scmp.ne.s32.totalorder %s138, %s141
      %p150 = scmp.eq.s32.totalorder %s22, 2
      %p151 = por %p149, %p150
      %p152 = scmp.ne.s32.totalorder %s141, %s142
      %p153 = scmp.eq.s32.totalorder %s22, 0
      %p154 = por %p152, %p153
      %p155 = scmp.ne.s32.totalorder %s141, %s142
      %p156 = scmp.eq.s32.totalorder %s23, 2
      %p157 = por %p155, %p156
      %p159 = scmp.ne.s32.totalorder %s142, %s158
      %p160 = scmp.eq.s32.totalorder %s23, 0
      %p161 = por %p159, %p160
      %s162 = ssub.s32 %s25, %s32
      %p163 = scmp.eq.s32.totalorder %s162, 0
      %s165 = sadd.s32 %s164, 1
      %s166 = scalar_select %p163, %s164, %s165
      %p169 = pneg %p163
      %p170 = scmp.eq.s32.totalorder %s17, 2
      %p171 = por %p169, %p170
      %p172 = scmp.ne.s32.totalorder %s164, %s167
      %p173 = scmp.eq.s32.totalorder %s17, 0
      %p174 = por %p172, %p173
      %p175 = scmp.ne.s32.totalorder %s164, %s167
      %p176 = scmp.eq.s32.totalorder %s22, 2
      %p177 = por %p175, %p176
      %p178 = scmp.ne.s32.totalorder %s167, %s168
      %p179 = scmp.eq.s32.totalorder %s22, 0
      %p180 = por %p178, %p179
      %p181 = scmp.ne.s32.totalorder %s167, %s168
      %p182 = scmp.eq.s32.totalorder %s23, 2
      %p183 = por %p181, %p182
      %p185 = scmp.ne.s32.totalorder %s168, %s184
      %p186 = scmp.eq.s32.totalorder %s23, 0
      %p187 = por %p185, %p186
      %p188 = scmp.le.s32.totalorder 1, %s17
      %p189 = scmp.lt.s32.totalorder %s17, 4
      %p190 = pnand %p188, %p189
      %p191 = pneg %p190
      // Predicated region
      $region9: #{tpu_custom_call.1} parent=5 // pred_check
        _
      $region10: #{tpu_custom_call.1} parent=5 // pred_check_branch
        %193 = sbr.rel (%p190) target = $region12
      $region11: #{tpu_custom_call.1} parent=5 // pred_region
        %s194 = ssub.s32 %s17, 1
        // Predicated region
        $region13: #{tpu_custom_call.1} parent=11 // pred_check
          %p195 = pneg %p50
        $region14: #{tpu_custom_call.1} parent=11 // pred_check_branch
          %197 = sbr.rel (%p195) target = $region16
        $region15: #{tpu_custom_call.1} parent=11 // pred_region
          %s199 = ssub.s32 1024, 1024
          %200 = vsyncadd [#allocation5], %s199
          %s201 = sshll.u32 [#allocation4], 4
          %s202 = int_to_ptr.vmem [resolvable:$true] %s201
          %207 = dma.hbm_to_vmem [thread:$0]  %s1, 1024, %s202, [#allocation5], 64, 64, 4
        $region16: #{tpu_custom_call.1} parent=11 // pred_fallthru
          _
      $region12: #{tpu_custom_call.1} parent=5 // pred_fallthru
        _
      %p208 = scmp.lt.s32.totalorder %s17, 3
      // Predicated region
      $region17: #{tpu_custom_call.1} parent=5 // pred_check
        %p209 = pneg %p208
      $region18: #{tpu_custom_call.1} parent=5 // pred_check_branch
        %211 = sbr.rel (%p209) target = $region20
      $region19: #{tpu_custom_call.1} parent=5 // pred_region
        // Predicated region
        $region21: #{tpu_custom_call.1} parent=19 // pred_check
          %p212 = pneg %p70
        $region22: #{tpu_custom_call.1} parent=19 // pred_check_branch
          %214 = sbr.rel (%p212) target = $region24
        $region23: #{tpu_custom_call.1} parent=19 // pred_region
          %s215 = sand.u32 %s17, 1
          %s216 = scalar_lea.sflag [#allocation8], %s215
          %s217 = sand.u32 %s60, 1
          %s218 = smul.addr %s217, 64
          %s219 = scalar_lea.vmem [#allocation7], %s218
          %s221 = ssub.s32 1024, 1024
          %222 = vsyncadd %s216, %s221
          %s223 = smul.addr %s24, 16
          %s224 = smul.addr %s223, 64
          %s225 = scalar_lea.hbm %s2, %s224
          %s226 = sshll.u32 %s219, 4
          %s227 = int_to_ptr.vmem [resolvable:$true] %s226
          %232 = dma.hbm_to_vmem [thread:$0]  %s225, 1024, %s227, %s216, 64, 64, 4
        $region24: #{tpu_custom_call.1} parent=19 // pred_fallthru
          _
        // Predicated region
        $region25: #{tpu_custom_call.1} parent=19 // pred_check
          %p233 = pneg %p96
        $region26: #{tpu_custom_call.1} parent=19 // pred_check_branch
          %235 = sbr.rel (%p233) target = $region28
        $region27: #{tpu_custom_call.1} parent=19 // pred_region
          %p236 = scmp.lt.s32.totalorder %s24, 2
          %s237 = scalar_select %p236, %s24, 2
          %s238 = scalar_lea.vmem %s3, %s237
        $region28: #{tpu_custom_call.1} parent=19 // pred_fallthru
          _
        // Predicated region
        $region29: #{tpu_custom_call.1} parent=19 // pred_check
          %p239 = pneg %p122
        $region30: #{tpu_custom_call.1} parent=19 // pred_check_branch
          %241 = sbr.rel (%p239) target = $region32
        $region31: #{tpu_custom_call.1} parent=19 // pred_region
          %s242 = sand.u32 %s17, 1
          %s243 = scalar_lea.sflag [#allocation8], %s242
          %s244 = sand.u32 %s112, 1
          %s245 = smul.addr %s244, 64
          %s246 = scalar_lea.vmem [#allocation9], %s245
          %s248 = ssub.s32 1024, 1024
          %249 = vsyncadd %s243, %s248
          %s250 = smul.addr %s24, 16
          %s251 = smul.addr %s250, 64
          %s252 = scalar_lea.hbm %s4, %s251
          %s253 = sshll.u32 %s246, 4
          %s254 = int_to_ptr.vmem [resolvable:$true] %s253
          %259 = dma.hbm_to_vmem [thread:$0]  %s252, 1024, %s254, %s243, 64, 64, 4
        $region32: #{tpu_custom_call.1} parent=19 // pred_fallthru
          _
        // Predicated region
        $region33: #{tpu_custom_call.1} parent=19 // pred_check
          %p260 = pneg %p148
        $region34: #{tpu_custom_call.1} parent=19 // pred_check_branch
          %262 = sbr.rel (%p260) target = $region36
        $region35: #{tpu_custom_call.1} parent=19 // pred_region
          %p263 = scmp.lt.s32.totalorder %s24, 2
          %s264 = scalar_select %p263, %s24, 2
          %s265 = scalar_lea.vmem %s5, %s264
        $region36: #{tpu_custom_call.1} parent=19 // pred_fallthru
          _
      $region20: #{tpu_custom_call.1} parent=5 // pred_fallthru
        _
      %p266 = scmp.le.s32.totalorder 1, %s17
      %p267 = scmp.lt.s32.totalorder %s17, 4
      %p268 = pnand %p266, %p267
      %p269 = pneg %p268
      // Predicated region
      $region37: #{tpu_custom_call.1} parent=5 // pred_check
        _
      $region38: #{tpu_custom_call.1} parent=5 // pred_check_branch
        %271 = sbr.rel (%p268) target = $region40
      $region39: #{tpu_custom_call.1} parent=5 // pred_region
        %s272 = ssub.s32 %s17, 1
        // Predicated region
        $region41: #{tpu_custom_call.1} parent=39 // pred_check
          %p273 = pneg %p50
        $region42: #{tpu_custom_call.1} parent=39 // pred_check_branch
          %275 = sbr.rel (%p273) target = $region44
        $region43: #{tpu_custom_call.1} parent=39 // pred_region
          %276 = dma.done [#allocation5], 1024
        $region44: #{tpu_custom_call.1} parent=39 // pred_fallthru
          _
        %s277 = sand.u32 %s22, 1
        %s278 = scalar_lea.sflag [#allocation8], %s277
        %s279 = sand.u32 %s63, 1
        %s280 = smul.addr %s279, 64
        %s281 = scalar_lea.vmem [#allocation7], %s280
        // Predicated region
        $region45: #{tpu_custom_call.1} parent=39 // pred_check
          %p282 = pneg %p76
        $region46: #{tpu_custom_call.1} parent=39 // pred_check_branch
          %284 = sbr.rel (%p282) target = $region48
        $region47: #{tpu_custom_call.1} parent=39 // pred_region
          %285 = dma.done %s278, 1024
        $region48: #{tpu_custom_call.1} parent=39 // pred_fallthru
          _
        %s286 = sand.u32 %s22, 1
        %s287 = scalar_lea.sflag [#allocation8], %s286
        %s288 = sand.u32 %s115, 1
        %s289 = smul.addr %s288, 64
        %s290 = scalar_lea.vmem [#allocation9], %s289
        // Predicated region
        $region49: #{tpu_custom_call.1} parent=39 // pred_check
          %p291 = pneg %p128
        $region50: #{tpu_custom_call.1} parent=39 // pred_check_branch
          %293 = sbr.rel (%p291) target = $region52
        $region51: #{tpu_custom_call.1} parent=39 // pred_region
          %294 = dma.done %s287, 1024
        $region52: #{tpu_custom_call.1} parent=39 // pred_fallthru
          _
        %p295 = pneg %p50
        %p296 = pneg %p47
        %s297 = sand.u32 %s22, 1
        %s298 = scalar_lea.sflag [#allocation8], %s297
        %s299 = sand.u32 %s63, 1
        %s300 = smul.addr %s299, 64
        %s301 = scalar_lea.vmem [#allocation7], %s300
        %p302 = pneg %p76
        %p303 = pneg %p73
        %p304 = scmp.lt.s32.totalorder %s26, 2
        %s305 = scalar_select %p304, %s26, 2
        %s306 = scalar_lea.vmem %s3, %s305
        %p307 = pneg %p102
        %p308 = pneg %p99
        %s309 = sand.u32 %s22, 1
        %s310 = scalar_lea.sflag [#allocation8], %s309
        %s311 = sand.u32 %s115, 1
        %s312 = smul.addr %s311, 64
        %s313 = scalar_lea.vmem [#allocation9], %s312
        %p314 = pneg %p128
        %p315 = pneg %p125
        %p316 = scmp.lt.s32.totalorder %s26, 2
        %s317 = scalar_select %p316, %s26, 2
        %s318 = scalar_lea.vmem %s5, %s317
        %p319 = pneg %p154
        %p320 = pneg %p151
        %p321 = pneg %p180
        %p322 = pneg %p177
        %p323 = scmp.lt.s32.totalorder %s26, 2
        %s324 = scalar_select %p323, %s26, 2
        %s325 = scalar_lea.vmem %s3, %s324
        %p326 = scmp.lt.s32.totalorder %s26, 2
        %s327 = scalar_select %p326, %s26, 2
        %s328 = scalar_lea.vmem %s5, %s327
        %s329 = smul.u32 16, %s27
        %p331 = scmp.eq.s32.totalorder %s26, 0
        %p332 = scmp.eq.s32.totalorder %s27, 0
        %p333 = pnand %p331, %p332
        %p334 = pneg %p333
        // Predicated region
        $region53: #{tpu_custom_call.1} parent=39 // pred_check
          _
        $region54: #{tpu_custom_call.1} parent=39 // pred_check_branch
          %336 = sbr.rel (%p333) target = $region56
        $region55: #{tpu_custom_call.1} parent=39 // pred_region
          // Predicated region
          $region57: #{tpu_custom_call.1} parent=55 // pred_check
            _
          $region58: #{tpu_custom_call.1} parent=55 // pred_check_branch
            %338 = sbr.rel target = $region60
          $region59: #{tpu_custom_call.1} parent=55 // pred_region
            %339 = sst [smem:[#allocation13]] [#allocation12]
            %340 = sst [smem:[#allocation14]] [#allocation11]
          $region60: #{tpu_custom_call.1} parent=55 // pred_fallthru
            _
          %342 = shalt.err (0)
          %s344 = sshll.u32 [#allocation2], 4
          %s345 = int_to_ptr.vmem [resolvable:$true] %s344
          %347 = dma.hbm_to_vmem [thread:$0]  %s0, 1024, %s345, [#allocation3]
          %s348 = smul.u32 4, 16
          %s349 = smul.u32 %s348, 1
          %s350 = sshll.u32 %s349, 4
          %351 = dma.done [#allocation3], %s350
        $region56: #{tpu_custom_call.1} parent=39 // pred_fallthru
          _
        %p352 = scmp.lt.s32.totalorder %s26, 0
        %s353 = ssub.s32 0, %s26
        %s354 = scalar_select %p352, %s353, %s26
        %s355 = sand.u32 %s354, 1
        %s356 = ssub.s32 0, %s355
        %s357 = scalar_select %p352, %s356, %s355
        %p358 = scmp.ne.s32.totalorder %s357, 0
        %p359 = scmp.lt.s32.totalorder %s357, 0
        %p360 = pnand %p359, %p358
        %p361 = pneg %p360
        %s362 = sadd.s32 %s357, 2
        %s363 = scalar_select %p361, %s362, %s357
        %s364 = ssub.s32 1, %s363
        %s365 = smul.u32 %s27, 128
        %s366 = sshra.s32 %s365, 3
        %s367 = sand.u32 %s365, 7
        %s368 = smul.addr %s366, 4
        %s369 = scalar_lea.vmem [#allocation4], %s368
        %v370 = vld [vmem:[%s369] sm:$0xf]
        %v371 = vld [vmem:[%s369 + $0x4] sm:$0xf]
        %v372 = vld [vmem:[%s369 + $0x8] sm:$0xf]
        %v373 = vld [vmem:[%s369 + $0xc] sm:$0xf]
        %v374 = vld [vmem:[%s369 + $0x10] sm:$0xf]
        %v375 = vld [vmem:[%s369 + $0x14] sm:$0xf]
        %v376 = vld [vmem:[%s369 + $0x18] sm:$0xf]
        %v377 = vld [vmem:[%s369 + $0x1c] sm:$0xf]
        %v378 = vld [vmem:[%s369 + $0x20] sm:$0xf]
        %v379 = vld [vmem:[%s369 + $0x24] sm:$0xf]
        %v380 = vld [vmem:[%s369 + $0x28] sm:$0xf]
        %v381 = vld [vmem:[%s369 + $0x2c] sm:$0xf]
        %v382 = vld [vmem:[%s369 + $0x30] sm:$0xf]
        %v383 = vld [vmem:[%s369 + $0x34] sm:$0xf]
        %v384 = vld [vmem:[%s369 + $0x38] sm:$0xf]
        %v385 = vld [vmem:[%s369 + $0x3c] sm:$0xf]
        %s386 = smul.u32 %s363, 8
        %s387 = smul.addr %s386, 8
        %s388 = scalar_lea.vmem [#allocation2], %s387
        %v389 = vld [vmem:[%s388] sm:$0xff]
        %v390 = vld [vmem:[%s388 + $0x8] sm:$0xff]
        %v391 = vld [vmem:[%s388 + $0x10] sm:$0xff]
        %v392 = vld [vmem:[%s388 + $0x18] sm:$0xff]
        %v393 = vld [vmem:[%s388 + $0x20] sm:$0xff]
        %v394 = vld [vmem:[%s388 + $0x28] sm:$0xff]
        %v395 = vld [vmem:[%s388 + $0x30] sm:$0xff]
        %v396 = vld [vmem:[%s388 + $0x38] sm:$0xff]
        %v413 = vunpack.c.l.b16 %v370
        %v414 = vunpack.c.l.b16 %v371
        %v415 = vunpack.c.l.b16 %v372
        %v416 = vunpack.c.l.b16 %v373
        %v417 = vunpack.c.l.b16 %v374
        %v418 = vunpack.c.l.b16 %v375
        %v419 = vunpack.c.l.b16 %v376
        %v420 = vunpack.c.l.b16 %v377
        %v421 = vunpack.c.l.b16 %v378
        %v422 = vunpack.c.l.b16 %v379
        %v423 = vunpack.c.l.b16 %v380
        %v424 = vunpack.c.l.b16 %v381
        %v425 = vunpack.c.l.b16 %v382
        %v426 = vunpack.c.l.b16 %v383
        %v427 = vunpack.c.l.b16 %v384
        %v428 = vunpack.c.l.b16 %v385
        %v429 = vpack.c.b16 %v414, %v413
        %v430 = vpack.c.b16 %v416, %v415
        %v431 = vpack.c.b16 %v418, %v417
        %v432 = vpack.c.b16 %v420, %v419
        %v433 = vpack.c.b16 %v422, %v421
        %v434 = vpack.c.b16 %v424, %v423
        %v435 = vpack.c.b16 %v426, %v425
        %v436 = vpack.c.b16 %v428, %v427
        %445 = vmatprep.subr.bf16.mxu0 0
        %446 = vmatpush1.bf16.msra.mxu0 %v389
        %447 = vmatprep.subr.bf16.mxu0 0
        %448 = vmatpush1.bf16.msra.mxu0 %v390
        %449 = vmatprep.subr.bf16.mxu0 0
        %450 = vmatpush1.bf16.msra.mxu0 %v391
        %451 = vmatprep.subr.bf16.mxu0 0
        %452 = vmatpush1.bf16.msra.mxu0 %v392
        %453 = vmatprep.subr.bf16.mxu0 0
        %454 = vmatpush1.bf16.msra.mxu0 %v393
        %455 = vmatprep.subr.bf16.mxu0 0
        %456 = vmatpush1.bf16.msra.mxu0 %v394
        %457 = vmatprep.subr.bf16.mxu0 0
        %458 = vmatpush1.bf16.msra.mxu0 %v395
        %459 = vmatprep.subr.bf16.mxu0 0
        %460 = vmatpush1.bf16.msra.mxu0 %v396
        %461 = vmatprep.subr.bf16.mxu0 0
        %462 = vmatpush1.bf16.msra.mxu0 0
        %463 = vmatprep.subr.bf16.mxu0 0
        %464 = vmatpush1.bf16.msra.mxu0 0
        %465 = vmatprep.subr.bf16.mxu0 0
        %466 = vmatpush1.bf16.msra.mxu0 0
        %467 = vmatprep.subr.bf16.mxu0 0
        %468 = vmatpush1.bf16.msra.mxu0 0
        %469 = vmatprep.subr.bf16.mxu0 0
        %470 = vmatpush1.bf16.msra.mxu0 0
        %471 = vmatprep.subr.bf16.mxu0 0
        %472 = vmatpush1.bf16.msra.mxu0 0
        %473 = vmatprep.subr.bf16.mxu0 0
        %474 = vmatpush1.bf16.msra.mxu0 0
        %475 = vmatprep.subr.bf16.mxu0 0
        %476 = vmatpush1.bf16.msra.mxu0 0
        %477 = vmatprep.mubr.bf16.mxu0 0
        %478 = vmatmul.mubr.bf16.gmra.mrb[0].mxu0 %v429
        %v479 = vpop.f32.mrb[0].mxu0
        %v480 = vadd.f32 0.0, %v479
        %v481 = vpop.f32.mrb[0].mxu0
        %v482 = vpop.f32.mrb[0].mxu0
        %v483 = vadd.f32 0.0, %v482
        %v484 = vpop.f32.mrb[0].mxu0
        %485 = vmatprep.mubr.bf16.mxu0 0
        %486 = vmatmul.mubr.bf16.gmra.mrb[0].mxu0 %v430
        %v487 = vpop.f32.mrb[0].mxu0
        %v488 = vadd.f32 0.0, %v487
        %v489 = vpop.f32.mrb[0].mxu0
        %v490 = vpop.f32.mrb[0].mxu0
        %v491 = vadd.f32 0.0, %v490
        %v492 = vpop.f32.mrb[0].mxu0
        %493 = vmatprep.mubr.bf16.mxu0 0
        %494 = vmatmul.mubr.bf16.gmra.mrb[0].mxu0 %v431
        %v495 = vpop.f32.mrb[0].mxu0
        %v496 = vadd.f32 0.0, %v495
        %v497 = vpop.f32.mrb[0].mxu0
        %v498 = vpop.f32.mrb[0].mxu0
        %v499 = vadd.f32 0.0, %v498
        %v500 = vpop.f32.mrb[0].mxu0
        %501 = vmatprep.mubr.bf16.mxu0 0
        %502 = vmatmul.mubr.bf16.gmra.mrb[0].mxu0 %v432
        %v503 = vpop.f32.mrb[0].mxu0
        %v504 = vadd.f32 0.0, %v503
        %v505 = vpop.f32.mrb[0].mxu0
        %v506 = vpop.f32.mrb[0].mxu0
        %v507 = vadd.f32 0.0, %v506
        %v508 = vpop.f32.mrb[0].mxu0
        %509 = vmatprep.mubr.bf16.mxu0 0
        %510 = vmatmul.mubr.bf16.gmra.mrb[0].mxu0 %v433
        %v511 = vpop.f32.mrb[0].mxu0
        %v512 = vadd.f32 0.0, %v511
        %v513 = vpop.f32.mrb[0].mxu0
        %v514 = vpop.f32.mrb[0].mxu0
        %v515 = vadd.f32 0.0, %v514
        %v516 = vpop.f32.mrb[0].mxu0
        %517 = vmatprep.mubr.bf16.mxu0 0
        %518 = vmatmul.mubr.bf16.gmra.mrb[0].mxu0 %v434
        %v519 = vpop.f32.mrb[0].mxu0
        %v520 = vadd.f32 0.0, %v519
        %v521 = vpop.f32.mrb[0].mxu0
        %v522 = vpop.f32.mrb[0].mxu0
        %v523 = vadd.f32 0.0, %v522
        %v524 = vpop.f32.mrb[0].mxu0
        %525 = vmatprep.mubr.bf16.mxu0 0
        %526 = vmatmul.mubr.bf16.gmra.mrb[0].mxu0 %v435
        %v527 = vpop.f32.mrb[0].mxu0
        %v528 = vadd.f32 0.0, %v527
        %v529 = vpop.f32.mrb[0].mxu0
        %v530 = vpop.f32.mrb[0].mxu0
        %v531 = vadd.f32 0.0, %v530
        %v532 = vpop.f32.mrb[0].mxu0
        %533 = vmatprep.mubr.bf16.mxu0 0
        %534 = vmatmul.mubr.bf16.gmra.mrb[0].mxu0 %v436
        %v535 = vpop.f32.mrb[0].mxu0
        %v536 = vadd.f32 0.0, %v535
        %v537 = vpop.f32.mrb[0].mxu0
        %v538 = vpop.f32.mrb[0].mxu0
        %v539 = vadd.f32 0.0, %v538
        %v540 = vpop.f32.mrb[0].mxu0
        %541 = vdwg.mxu0
        %v542 = vpack.c.bf16 %v483, %v480
        %v543 = vpack.c.bf16 %v491, %v488
        %v544 = vpack.c.bf16 %v499, %v496
        %v545 = vpack.c.bf16 %v507, %v504
        %v546 = vpack.c.bf16 %v515, %v512
        %v547 = vpack.c.bf16 %v523, %v520
        %v548 = vpack.c.bf16 %v531, %v528
        %v549 = vpack.c.bf16 %v539, %v536
        %v550 = vld [vmem:[%s281] sm:$0xf]
        %v551 = vld [vmem:[%s281 + $0x4] sm:$0xf]
        %v552 = vld [vmem:[%s281 + $0x8] sm:$0xf]
        %v553 = vld [vmem:[%s281 + $0xc] sm:$0xf]
        %v554 = vld [vmem:[%s281 + $0x10] sm:$0xf]
        %v555 = vld [vmem:[%s281 + $0x14] sm:$0xf]
        %v556 = vld [vmem:[%s281 + $0x18] sm:$0xf]
        %v557 = vld [vmem:[%s281 + $0x1c] sm:$0xf]
        %v558 = vld [vmem:[%s281 + $0x20] sm:$0xf]
        %v559 = vld [vmem:[%s281 + $0x24] sm:$0xf]
        %v560 = vld [vmem:[%s281 + $0x28] sm:$0xf]
        %v561 = vld [vmem:[%s281 + $0x2c] sm:$0xf]
        %v562 = vld [vmem:[%s281 + $0x30] sm:$0xf]
        %v563 = vld [vmem:[%s281 + $0x34] sm:$0xf]
        %v564 = vld [vmem:[%s281 + $0x38] sm:$0xf]
        %v565 = vld [vmem:[%s281 + $0x3c] sm:$0xf]
        %v566 = vld [vmem:[%s325] sm:$0x1]
        %v568 = vlaneseq
        %v569 = vshrl.u32 %v568, 7
        %v570 = vsub.s32 0, %v569
        %v571 = vrot.slane %v566, %v570
        %v589 = vunpack.c.l.b16 %v550
        %v590 = vunpack.c.l.b16 %v551
        %v591 = vunpack.c.l.b16 %v552
        %v592 = vunpack.c.l.b16 %v553
        %v593 = vunpack.c.l.b16 %v554
        %v594 = vunpack.c.l.b16 %v555
        %v595 = vunpack.c.l.b16 %v556
        %v596 = vunpack.c.l.b16 %v557
        %v597 = vunpack.c.l.b16 %v558
        %v598 = vunpack.c.l.b16 %v559
        %v599 = vunpack.c.l.b16 %v560
        %v600 = vunpack.c.l.b16 %v561
        %v601 = vunpack.c.l.b16 %v562
        %v602 = vunpack.c.l.b16 %v563
        %v603 = vunpack.c.l.b16 %v564
        %v604 = vunpack.c.l.b16 %v565
        %v605 = vpack.c.b16 %v590, %v589
        %v606 = vpack.c.b16 %v592, %v591
        %v607 = vpack.c.b16 %v594, %v593
        %v608 = vpack.c.b16 %v596, %v595
        %v609 = vpack.c.b16 %v598, %v597
        %v610 = vpack.c.b16 %v600, %v599
        %v611 = vpack.c.b16 %v602, %v601
        %v612 = vpack.c.b16 %v604, %v603
        %621 = vmatprep.subr.bf16.mxu0 0
        %622 = vmatpush1.bf16.msra.mxu0 %v605
        %623 = vmatprep.subr.bf16.mxu0 0
        %624 = vmatpush1.bf16.msra.mxu0 %v606
        %625 = vmatprep.subr.bf16.mxu0 0
        %626 = vmatpush1.bf16.msra.mxu0 %v607
        %627 = vmatprep.subr.bf16.mxu0 0
        %628 = vmatpush1.bf16.msra.mxu0 %v608
        %629 = vmatprep.subr.bf16.mxu0 0
        %630 = vmatpush1.bf16.msra.mxu0 %v609
        %631 = vmatprep.subr.bf16.mxu0 0
        %632 = vmatpush1.bf16.msra.mxu0 %v610
        %633 = vmatprep.subr.bf16.mxu0 0
        %634 = vmatpush1.bf16.msra.mxu0 %v611
        %635 = vmatprep.subr.bf16.mxu0 0
        %636 = vmatpush1.bf16.msra.mxu0 %v612
        %637 = vmatprep.subr.bf16.mxu0 0
        %638 = vmatpush1.bf16.msra.mxu0 0
        %639 = vmatprep.subr.bf16.mxu0 0
        %640 = vmatpush1.bf16.msra.mxu0 0
        %641 = vmatprep.subr.bf16.mxu0 0
        %642 = vmatpush1.bf16.msra.mxu0 0
        %643 = vmatprep.subr.bf16.mxu0 0
        %644 = vmatpush1.bf16.msra.mxu0 0
        %645 = vmatprep.subr.bf16.mxu0 0
        %646 = vmatpush1.bf16.msra.mxu0 0
        %647 = vmatprep.subr.bf16.mxu0 0
        %648 = vmatpush1.bf16.msra.mxu0 0
        %649 = vmatprep.subr.bf16.mxu0 0
        %650 = vmatpush1.bf16.msra.mxu0 0
        %651 = vmatprep.subr.bf16.mxu0 0
        %652 = vmatpush1.bf16.msra.mxu0 0
        %653 = vmatprep.mubr.bf16.mxu0 0
        %654 = vmatmul.mubr.bf16.gmra.mrb[0].mxu0 %v542
        %v655 = vpop.f32.mrb[0].mxu0
        %v656 = vadd.f32 %v571, %v655
        %v657 = vpop.f32.mrb[0].mxu0
        %v658 = vpop.f32.mrb[0].mxu0
        %v659 = vadd.f32 %v571, %v658
        %v660 = vpop.f32.mrb[0].mxu0
        %661 = vmatprep.mubr.bf16.mxu0 0
        %662 = vmatmul.mubr.bf16.gmra.mrb[0].mxu0 %v543
        %v663 = vpop.f32.mrb[0].mxu0
        %v664 = vadd.f32 %v571, %v663
        %v665 = vpop.f32.mrb[0].mxu0
        %v666 = vpop.f32.mrb[0].mxu0
        %v667 = vadd.f32 %v571, %v666
        %v668 = vpop.f32.mrb[0].mxu0
        %669 = vmatprep.mubr.bf16.mxu0 0
        %670 = vmatmul.mubr.bf16.gmra.mrb[0].mxu0 %v544
        %v671 = vpop.f32.mrb[0].mxu0
        %v672 = vadd.f32 %v571, %v671
        %v673 = vpop.f32.mrb[0].mxu0
        %v674 = vpop.f32.mrb[0].mxu0
        %v675 = vadd.f32 %v571, %v674
        %v676 = vpop.f32.mrb[0].mxu0
        %677 = vmatprep.mubr.bf16.mxu0 0
        %678 = vmatmul.mubr.bf16.gmra.mrb[0].mxu0 %v545
        %v679 = vpop.f32.mrb[0].mxu0
        %v680 = vadd.f32 %v571, %v679
        %v681 = vpop.f32.mrb[0].mxu0
        %v682 = vpop.f32.mrb[0].mxu0
        %v683 = vadd.f32 %v571, %v682
        %v684 = vpop.f32.mrb[0].mxu0
        %685 = vmatprep.mubr.bf16.mxu0 0
        %686 = vmatmul.mubr.bf16.gmra.mrb[0].mxu0 %v546
        %v687 = vpop.f32.mrb[0].mxu0
        %v688 = vadd.f32 %v571, %v687
        %v689 = vpop.f32.mrb[0].mxu0
        %v690 = vpop.f32.mrb[0].mxu0
        %v691 = vadd.f32 %v571, %v690
        %v692 = vpop.f32.mrb[0].mxu0
        %693 = vmatprep.mubr.bf16.mxu0 0
        %694 = vmatmul.mubr.bf16.gmra.mrb[0].mxu0 %v547
        %v695 = vpop.f32.mrb[0].mxu0
        %v696 = vadd.f32 %v571, %v695
        %v697 = vpop.f32.mrb[0].mxu0
        %v698 = vpop.f32.mrb[0].mxu0
        %v699 = vadd.f32 %v571, %v698
        %v700 = vpop.f32.mrb[0].mxu0
        %701 = vmatprep.mubr.bf16.mxu0 0
        %702 = vmatmul.mubr.bf16.gmra.mrb[0].mxu0 %v548
        %v703 = vpop.f32.mrb[0].mxu0
        %v704 = vadd.f32 %v571, %v703
        %v705 = vpop.f32.mrb[0].mxu0
        %v706 = vpop.f32.mrb[0].mxu0
        %v707 = vadd.f32 %v571, %v706
        %v708 = vpop.f32.mrb[0].mxu0
        %709 = vmatprep.mubr.bf16.mxu0 0
        %710 = vmatmul.mubr.bf16.gmra.mrb[0].mxu0 %v549
        %v711 = vpop.f32.mrb[0].mxu0
        %v712 = vadd.f32 %v571, %v711
        %v713 = vpop.f32.mrb[0].mxu0
        %v714 = vpop.f32.mrb[0].mxu0
        %v715 = vadd.f32 %v571, %v714
        %v716 = vpop.f32.mrb[0].mxu0
        %717 = vdwg.mxu0
        %v718 = vmax.f32 %v656, 0.0
        %v719 = vmax.f32 %v659, 0.0
        %v720 = vmax.f32 %v664, 0.0
        %v721 = vmax.f32 %v667, 0.0
        %v722 = vmax.f32 %v672, 0.0
        %v723 = vmax.f32 %v675, 0.0
        %v724 = vmax.f32 %v680, 0.0
        %v725 = vmax.f32 %v683, 0.0
        %v726 = vmax.f32 %v688, 0.0
        %v727 = vmax.f32 %v691, 0.0
        %v728 = vmax.f32 %v696, 0.0
        %v729 = vmax.f32 %v699, 0.0
        %v730 = vmax.f32 %v704, 0.0
        %v731 = vmax.f32 %v707, 0.0
        %v732 = vmax.f32 %v712, 0.0
        %v733 = vmax.f32 %v715, 0.0
        %v734 = vpack.c.bf16 %v719, %v718
        %v735 = vpack.c.bf16 %v721, %v720
        %v736 = vpack.c.bf16 %v723, %v722
        %v737 = vpack.c.bf16 %v725, %v724
        %v738 = vpack.c.bf16 %v727, %v726
        %v739 = vpack.c.bf16 %v729, %v728
        %v740 = vpack.c.bf16 %v731, %v730
        %v741 = vpack.c.bf16 %v733, %v732
        %v742 = vld [vmem:[%s290] sm:$0xf]
        %v743 = vld [vmem:[%s290 + $0x4] sm:$0xf]
        %v744 = vld [vmem:[%s290 + $0x8] sm:$0xf]
        %v745 = vld [vmem:[%s290 + $0xc] sm:$0xf]
        %v746 = vld [vmem:[%s290 + $0x10] sm:$0xf]
        %v747 = vld [vmem:[%s290 + $0x14] sm:$0xf]
        %v748 = vld [vmem:[%s290 + $0x18] sm:$0xf]
        %v749 = vld [vmem:[%s290 + $0x1c] sm:$0xf]
        %v750 = vld [vmem:[%s290 + $0x20] sm:$0xf]
        %v751 = vld [vmem:[%s290 + $0x24] sm:$0xf]
        %v752 = vld [vmem:[%s290 + $0x28] sm:$0xf]
        %v753 = vld [vmem:[%s290 + $0x2c] sm:$0xf]
        %v754 = vld [vmem:[%s290 + $0x30] sm:$0xf]
        %v755 = vld [vmem:[%s290 + $0x34] sm:$0xf]
        %v756 = vld [vmem:[%s290 + $0x38] sm:$0xf]
        %v757 = vld [vmem:[%s290 + $0x3c] sm:$0xf]
        %v758 = vld [vmem:[%s328] sm:$0x1]
        %v760 = vlaneseq
        %v761 = vshrl.u32 %v760, 7
        %v762 = vsub.s32 0, %v761
        %v763 = vrot.slane %v758, %v762
        %v781 = vunpack.c.l.b16 %v742
        %v782 = vunpack.c.l.b16 %v743
        %v783 = vunpack.c.l.b16 %v744
        %v784 = vunpack.c.l.b16 %v745
        %v785 = vunpack.c.l.b16 %v746
        %v786 = vunpack.c.l.b16 %v747
        %v787 = vunpack.c.l.b16 %v748
        %v788 = vunpack.c.l.b16 %v749
        %v789 = vunpack.c.l.b16 %v750
        %v790 = vunpack.c.l.b16 %v751
        %v791 = vunpack.c.l.b16 %v752
        %v792 = vunpack.c.l.b16 %v753
        %v793 = vunpack.c.l.b16 %v754
        %v794 = vunpack.c.l.b16 %v755
        %v795 = vunpack.c.l.b16 %v756
        %v796 = vunpack.c.l.b16 %v757
        %v797 = vpack.c.b16 %v782, %v781
        %v798 = vpack.c.b16 %v784, %v783
        %v799 = vpack.c.b16 %v786, %v785
        %v800 = vpack.c.b16 %v788, %v787
        %v801 = vpack.c.b16 %v790, %v789
        %v802 = vpack.c.b16 %v792, %v791
        %v803 = vpack.c.b16 %v794, %v793
        %v804 = vpack.c.b16 %v796, %v795
        %813 = vmatprep.subr.bf16.mxu0 0
        %814 = vmatpush1.bf16.msra.mxu0 %v797
        %815 = vmatprep.subr.bf16.mxu0 0
        %816 = vmatpush1.bf16.msra.mxu0 %v798
        %817 = vmatprep.subr.bf16.mxu0 0
        %818 = vmatpush1.bf16.msra.mxu0 %v799
        %819 = vmatprep.subr.bf16.mxu0 0
        %820 = vmatpush1.bf16.msra.mxu0 %v800
        %821 = vmatprep.subr.bf16.mxu0 0
        %822 = vmatpush1.bf16.msra.mxu0 %v801
        %823 = vmatprep.subr.bf16.mxu0 0
        %824 = vmatpush1.bf16.msra.mxu0 %v802
        %825 = vmatprep.subr.bf16.mxu0 0
        %826 = vmatpush1.bf16.msra.mxu0 %v803
        %827 = vmatprep.subr.bf16.mxu0 0
        %828 = vmatpush1.bf16.msra.mxu0 %v804
        %829 = vmatprep.subr.bf16.mxu0 0
        %830 = vmatpush1.bf16.msra.mxu0 0
        %831 = vmatprep.subr.bf16.mxu0 0
        %832 = vmatpush1.bf16.msra.mxu0 0
        %833 = vmatprep.subr.bf16.mxu0 0
        %834 = vmatpush1.bf16.msra.mxu0 0
        %835 = vmatprep.subr.bf16.mxu0 0
        %836 = vmatpush1.bf16.msra.mxu0 0
        %837 = vmatprep.subr.bf16.mxu0 0
        %838 = vmatpush1.bf16.msra.mxu0 0
        %839 = vmatprep.subr.bf16.mxu0 0
        %840 = vmatpush1.bf16.msra.mxu0 0
        %841 = vmatprep.subr.bf16.mxu0 0
        %842 = vmatpush1.bf16.msra.mxu0 0
        %843 = vmatprep.subr.bf16.mxu0 0
        %844 = vmatpush1.bf16.msra.mxu0 0
        %845 = vmatprep.mubr.bf16.mxu0 0
        %846 = vmatmul.mubr.bf16.gmra.mrb[0].mxu0 %v734
        %v847 = vpop.f32.mrb[0].mxu0
        %v848 = vadd.f32 %v763, %v847
        %v849 = vpop.f32.mrb[0].mxu0
        %v850 = vpop.f32.mrb[0].mxu0
        %v851 = vadd.f32 %v763, %v850
        %v852 = vpop.f32.mrb[0].mxu0
        %853 = vmatprep.mubr.bf16.mxu0 0
        %854 = vmatmul.mubr.bf16.gmra.mrb[0].mxu0 %v735
        %v855 = vpop.f32.mrb[0].mxu0
        %v856 = vadd.f32 %v763, %v855
        %v857 = vpop.f32.mrb[0].mxu0
        %v858 = vpop.f32.mrb[0].mxu0
        %v859 = vadd.f32 %v763, %v858
        %v860 = vpop.f32.mrb[0].mxu0
        %861 = vmatprep.mubr.bf16.mxu0 0
        %862 = vmatmul.mubr.bf16.gmra.mrb[0].mxu0 %v736
        %v863 = vpop.f32.mrb[0].mxu0
        %v864 = vadd.f32 %v763, %v863
        %v865 = vpop.f32.mrb[0].mxu0
        %v866 = vpop.f32.mrb[0].mxu0
        %v867 = vadd.f32 %v763, %v866
        %v868 = vpop.f32.mrb[0].mxu0
        %869 = vmatprep.mubr.bf16.mxu0 0
        %870 = vmatmul.mubr.bf16.gmra.mrb[0].mxu0 %v737
        %v871 = vpop.f32.mrb[0].mxu0
        %v872 = vadd.f32 %v763, %v871
        %v873 = vpop.f32.mrb[0].mxu0
        %v874 = vpop.f32.mrb[0].mxu0
        %v875 = vadd.f32 %v763, %v874
        %v876 = vpop.f32.mrb[0].mxu0
        %877 = vmatprep.mubr.bf16.mxu0 0
        %878 = vmatmul.mubr.bf16.gmra.mrb[0].mxu0 %v738
        %v879 = vpop.f32.mrb[0].mxu0
        %v880 = vadd.f32 %v763, %v879
        %v881 = vpop.f32.mrb[0].mxu0
        %v882 = vpop.f32.mrb[0].mxu0
        %v883 = vadd.f32 %v763, %v882
        %v884 = vpop.f32.mrb[0].mxu0
        %885 = vmatprep.mubr.bf16.mxu0 0
        %886 = vmatmul.mubr.bf16.gmra.mrb[0].mxu0 %v739
        %v887 = vpop.f32.mrb[0].mxu0
        %v888 = vadd.f32 %v763, %v887
        %v889 = vpop.f32.mrb[0].mxu0
        %v890 = vpop.f32.mrb[0].mxu0
        %v891 = vadd.f32 %v763, %v890
        %v892 = vpop.f32.mrb[0].mxu0
        %893 = vmatprep.mubr.bf16.mxu0 0
        %894 = vmatmul.mubr.bf16.gmra.mrb[0].mxu0 %v740
        %v895 = vpop.f32.mrb[0].mxu0
        %v896 = vadd.f32 %v763, %v895
        %v897 = vpop.f32.mrb[0].mxu0
        %v898 = vpop.f32.mrb[0].mxu0
        %v899 = vadd.f32 %v763, %v898
        %v900 = vpop.f32.mrb[0].mxu0
        %901 = vmatprep.mubr.bf16.mxu0 0
        %902 = vmatmul.mubr.bf16.gmra.mrb[0].mxu0 %v741
        %v903 = vpop.f32.mrb[0].mxu0
        %v904 = vadd.f32 %v763, %v903
        %v905 = vpop.f32.mrb[0].mxu0
        %v906 = vpop.f32.mrb[0].mxu0
        %v907 = vadd.f32 %v763, %v906
        %v908 = vpop.f32.mrb[0].mxu0
        %909 = vdwg.mxu0
        %p910 = scmp.ne.s32.totalorder %s26, 2
        %v911 = vmax.f32 %v848, 0.0
        %v912 = vmax.f32 %v851, 0.0
        %v913 = vmax.f32 %v856, 0.0
        %v914 = vmax.f32 %v859, 0.0
        %v915 = vmax.f32 %v864, 0.0
        %v916 = vmax.f32 %v867, 0.0
        %v917 = vmax.f32 %v872, 0.0
        %v918 = vmax.f32 %v875, 0.0
        %v919 = vmax.f32 %v880, 0.0
        %v920 = vmax.f32 %v883, 0.0
        %v921 = vmax.f32 %v888, 0.0
        %v922 = vmax.f32 %v891, 0.0
        %v923 = vmax.f32 %v896, 0.0
        %v924 = vmax.f32 %v899, 0.0
        %v925 = vmax.f32 %v904, 0.0
        %v926 = vmax.f32 %v907, 0.0
        %s927 = scalar_select %p910, 1, 0
        %v928 = vstv %s927
        %vm929 = vcmp.eq.s32.totalorder %v928, 1
        %v930 = vsel %vm929, %v911, %v848
        %v931 = vsel %vm929, %v912, %v851
        %v932 = vsel %vm929, %v913, %v856
        %v933 = vsel %vm929, %v914, %v859
        %v934 = vsel %vm929, %v915, %v864
        %v935 = vsel %vm929, %v916, %v867
        %v936 = vsel %vm929, %v917, %v872
        %v937 = vsel %vm929, %v918, %v875
        %v938 = vsel %vm929, %v919, %v880
        %v939 = vsel %vm929, %v920, %v883
        %v940 = vsel %vm929, %v921, %v888
        %v941 = vsel %vm929, %v922, %v891
        %v942 = vsel %vm929, %v923, %v896
        %v943 = vsel %vm929, %v924, %v899
        %v944 = vsel %vm929, %v925, %v904
        %v945 = vsel %vm929, %v926, %v907
        %v946 = vpack.c.bf16 %v931, %v930
        %v947 = vpack.c.bf16 %v933, %v932
        %v948 = vpack.c.bf16 %v935, %v934
        %v949 = vpack.c.bf16 %v937, %v936
        %v950 = vpack.c.bf16 %v939, %v938
        %v951 = vpack.c.bf16 %v941, %v940
        %v952 = vpack.c.bf16 %v943, %v942
        %v953 = vpack.c.bf16 %v945, %v944
        %s954 = sshra.s32 %s365, 4
        %s955 = sand.u32 %s365, 15
        %s956 = smul.u32 %s364, 8
        %s957 = sadd.s32 %s954, %s956
        %s958 = smul.addr %s957, 8
        %s959 = scalar_lea.vmem [#allocation2], %s958
        %960 = vst [vmem:[%s959] sm:$0xff] %v946
        %961 = vst [vmem:[%s959 + $0x8] sm:$0xff] %v947
        %962 = vst [vmem:[%s959 + $0x10] sm:$0xff] %v948
        %963 = vst [vmem:[%s959 + $0x18] sm:$0xff] %v949
        %964 = vst [vmem:[%s959 + $0x20] sm:$0xff] %v950
        %965 = vst [vmem:[%s959 + $0x28] sm:$0xff] %v951
        %966 = vst [vmem:[%s959 + $0x30] sm:$0xff] %v952
        %967 = vst [vmem:[%s959 + $0x38] sm:$0xff] %v953
        %p968 = scmp.eq.s32.totalorder %s26, 2
        // Predicated region
        $region61: #{tpu_custom_call.1} parent=39 // pred_check
          %p969 = pneg %p968
        $region62: #{tpu_custom_call.1} parent=39 // pred_check_branch
          %971 = sbr.rel (%p969) target = $region64
        $region63: #{tpu_custom_call.1} parent=39 // pred_region
          %972 = vst [vmem:[#allocation10] sm:$0xff] %v930
          %973 = vst [vmem:[#allocation10 + $0x8] sm:$0xff] %v931
          %974 = vst [vmem:[#allocation10 + $0x10] sm:$0xff] %v932
          %975 = vst [vmem:[#allocation10 + $0x18] sm:$0xff] %v933
          %976 = vst [vmem:[#allocation10 + $0x20] sm:$0xff] %v934
          %977 = vst [vmem:[#allocation10 + $0x28] sm:$0xff] %v935
          %978 = vst [vmem:[#allocation10 + $0x30] sm:$0xff] %v936
          %979 = vst [vmem:[#allocation10 + $0x38] sm:$0xff] %v937
          %980 = vst [vmem:[#allocation10 + $0x40] sm:$0xff] %v938
          %981 = vst [vmem:[#allocation10 + $0x48] sm:$0xff] %v939
          %982 = vst [vmem:[#allocation10 + $0x50] sm:$0xff] %v940
          %983 = vst [vmem:[#allocation10 + $0x58] sm:$0xff] %v941
          %984 = vst [vmem:[#allocation10 + $0x60] sm:$0xff] %v942
          %985 = vst [vmem:[#allocation10 + $0x68] sm:$0xff] %v943
          %986 = vst [vmem:[#allocation10 + $0x70] sm:$0xff] %v944
          %987 = vst [vmem:[#allocation10 + $0x78] sm:$0xff] %v945
        $region64: #{tpu_custom_call.1} parent=39 // pred_fallthru
          _
        // Predicated region
        $region65: #{tpu_custom_call.1} parent=39 // pred_check
          %p988 = pneg %p177
        $region66: #{tpu_custom_call.1} parent=39 // pred_check_branch
          %990 = sbr.rel (%p988) target = $region68
        $region67: #{tpu_custom_call.1} parent=39 // pred_region
          %s991 = smul.u32 16, %s27
          %s993 = ssub.s32 2048, 2048
          %994 = vsyncadd [#allocation6], %s993
          %s995 = smul.addr %s991, 128
          %s996 = scalar_lea.hbm %s6, %s995
          %s997 = sshll.u32 [#allocation10], 4
          %s998 = int_to_ptr.vmem [resolvable:$true] %s997
          %1003 = dma.vmem_to_hbm [thread:$0]  %s998, 2048, %s996, [#allocation6], 128, 128, 8
        $region68: #{tpu_custom_call.1} parent=39 // pred_fallthru
          _
        // Predicated region
        $region69: #{tpu_custom_call.1} parent=39 // pred_check
          %p1004 = pneg %p177
        $region70: #{tpu_custom_call.1} parent=39 // pred_check_branch
          %1006 = sbr.rel (%p1004) target = $region72
        $region71: #{tpu_custom_call.1} parent=39 // pred_region
          %1007 = dma.done [#allocation6], 2048
        $region72: #{tpu_custom_call.1} parent=39 // pred_fallthru
          _
      $region40: #{tpu_custom_call.1} parent=5 // pred_fallthru
        _
      %p1008 = scmp.le.s32.totalorder 2, %s17
      // Predicated region
      $region73: #{tpu_custom_call.1} parent=5 // pred_check
        %p1009 = pneg %p1008
      $region74: #{tpu_custom_call.1} parent=5 // pred_check_branch
        %1011 = sbr.rel (%p1009) target = $region76
      $region75: #{tpu_custom_call.1} parent=5 // pred_region
        %s1012 = ssub.s32 %s17, 2
      $region76: #{tpu_custom_call.1} parent=5 // pred_fallthru
        _
    $region6: #{tpu_custom_call.1} parent=1 // loop_footer
      %s21 = sadd.s32 1, %s17
    $region7: #{tpu_custom_call.1} parent=1 // loop_footer_branch
      %16 = sbr.rel target = $region3
    $region8: #{tpu_custom_call.1} parent=1 // loop_exit
      _
    %1013 = vsyncpa [#allocation5], 1
    %s1014 = scalar_lea.sflag [#allocation5], 1
    %1015 = vsyncpa %s1014, 1
    %1016 = vsyncpa [#allocation8], 1
    %s1017 = scalar_lea.sflag [#allocation8], 1
    %1018 = vsyncpa %s1017, 1
    %1019 = vsyncpa [#allocation6], 1
    %s1020 = scalar_lea.sflag [#allocation6], 1
    %1021 = vsyncpa %s1020, 1
  %1022 = vsyncmov [#allocation3]
  %s1023 = vpop.sfrf %1022
  %p1024 = scmp.eq.s32.totalorder %s1023, 0
  %p1025 = pneg %p1024
  %1027 = shalt.err (%p1025)

</llo_original>
